<compile_context>
chip_gen: v7x
topology: tpu7x:2x2x1
jax: 0.10.0
libtpu: 0.0.40
codegen_flags: <defaults>
</compile_context>

<pallas_src>
import functools

import jax
import jax.numpy as jnp
from jax import lax
from jax.experimental import pallas as pl
from jax.experimental.pallas import tpu as pltpu

LANES = 128
TARGET_BLOCK_BYTES = 4 << 20     # ~4 MiB per input block per grid step
MIN_VMEM_LIMIT = 24 << 20
MAX_VMEM_LIMIT = 48 << 20        # leave headroom under v7x's 64 MiB physical VMEM


def _itemsize(dtype):
    return jnp.dtype(dtype).itemsize


def _sublane_multiple(dtype):
    # Native tiling is (8,128) for 4-byte dtypes; sub-32-bit dtypes pack along
    # sublanes (bf16 -> 16, int8/fp8 -> 32).
    return max(8, 32 // _itemsize(dtype))


def _num_tensorcores():
    """2 for chips exposing 2 TensorCores per JAX device (v7x/v4/v5p), else 1."""
    try:
        kind = jax.devices()[0].device_kind.lower()
    except Exception:
        return 1
    if any(tag in kind for tag in ("v7", "7x", "v4", "v5p")):
        return 2
    return 1


def _iou_kernel(x_ref, t_ref, inter_ref, total_ref, *,
                steps_per_core, rows_total, block_rows, ilp,
                has_partial, has_empty):
    c = pl.program_id(0)      # TensorCore / partial-sum slot ("parallel")
    i = pl.program_id(1)      # sequential reduction step within this core

    @pl.when(i == 0)
    def _init():
        inter_ref[...] = jnp.zeros_like(inter_ref)
        total_ref[...] = jnp.zeros_like(total_ref)

    step = c * steps_per_core + i                   # logical (unclamped) block idx
    valid_rows = rows_total - step * block_rows     # real rows in this block
    groups = block_rows // (8 * ilp)

    def _accumulate(apply_row_mask):
        x = x_ref[...].astype(jnp.float32)
        t = t_ref[...].astype(jnp.float32)
        s = jax.nn.sigmoid(x)
        prod = s * t
        tot = s + t
        if apply_row_mask:
            # Only the single globally-last (partial) block runs this branch.
            # Garbage rows (overhanging DMA) are forced to 0 by the select.
            row = lax.broadcasted_iota(jnp.int32, (block_rows, LANES), 0)
            keep = row < valid_rows
            prod = jnp.where(keep, prod, 0.0)
            tot = jnp.where(keep, tot, 0.0)
        # Sublane-group split: pure VPU vreg adds; `ilp` independent partial
        # accumulators break the dependent add chain (helps on v7x).
        inter_ref[...] += jnp.sum(prod.reshape(groups, ilp, 8, LANES), axis=0)[None]
        total_ref[...] += jnp.sum(tot.reshape(groups, ilp, 8, LANES), axis=0)[None]

    if not has_partial and not has_empty:
        # Every block is full: no masking, no gating (fast common path).
        _accumulate(apply_row_mask=False)
    else:
        @pl.when(valid_rows >= block_rows)          # full block: unmasked
        def _full():
            _accumulate(apply_row_mask=False)

        if has_partial:
            @pl.when(jnp.logical_and(valid_rows > 0, valid_rows < block_rows))
            def _partial():                          # ragged last block
                _accumulate(apply_row_mask=True)
        # valid_rows <= 0: clamped duplicate block -> skip compute entirely.


def iou_loss(inputs, targets, smooth=1.0):
    """Pallas TPU implementation of IoULoss.forward."""
    # For contiguous inputs ravel/reshape below are layout-preserving (no extra
    # HBM pass); only a non-lane-aligned tail pays a small slice.
    x = jnp.ravel(inputs)
    t = jnp.ravel(targets)
    n = x.shape[0]

    sub = max(_sublane_multiple(x.dtype), _sublane_multiple(t.dtype))
    chunk = sub * LANES
    n_main = (n // chunk) * chunk

    # Tail (< sub*128 elements) handled with plain XLA instead of a full-array pad.
    if n_main < n:
        xt = x[n_main:].astype(jnp.float32)
        tt = t[n_main:].astype(jnp.float32)
        st = jax.nn.sigmoid(xt)
        inter_tail = jnp.sum(st * tt)
        total_tail = jnp.sum(st + tt)
    else:
        inter_tail = jnp.float32(0.0)
        total_tail = jnp.float32(0.0)

    if n_main == 0:
        intersection = inter_tail
        total = total_tail
    else:
        if n_main < n:
            # Rare misaligned case: prefix slice costs one extra pass.
            # TODO(synk): a manual-DMA ragged kernel could avoid even this.
            x_main, t_main = x[:n_main], t[:n_main]
        else:
            x_main, t_main = x, t

        rows = n_main // LANES
        max_item = max(_itemsize(x.dtype), _itemsize(t.dtype))
        block_cap = max(sub, TARGET_BLOCK_BYTES // (LANES * max_item))
        block_rows = min(block_cap, rows)
        steps_total = pl.cdiv(rows, block_rows)

        ncores = min(_num_tensorcores(), steps_total)
        steps_per_core = pl.cdiv(steps_total, ncores)

        has_partial = (rows % block_rows) != 0
        has_empty = (ncores * steps_per_core) != steps_total

        if block_rows % 32 == 0:
            ilp = 4
        elif block_rows % 16 == 0:
            ilp = 2
        else:
            ilp = 1

        x2 = x_main.reshape(rows, LANES)
        t2 = t_main.reshape(rows, LANES)

        def in_map(c, i):
            # Clamp so DMAs never go fully out of bounds; a clamped duplicate
            # block is skipped inside the kernel (valid_rows <= 0 there).
            return (jnp.minimum(c * steps_per_core + i, steps_total - 1), 0)

        kernel = functools.partial(
            _iou_kernel,
            steps_per_core=steps_per_core,
            rows_total=rows,
            block_rows=block_rows,
            ilp=ilp,
            has_partial=has_partial,
            has_empty=has_empty,
        )

        # Double-buffered input blocks dominate VMEM; add slack but stay well
        # under v7x's 64 MiB physical VMEM (v5e/v6e have 128 MiB).
        vmem_needed = 2 * block_rows * LANES * (_itemsize(x.dtype) + _itemsize(t.dtype))
        vmem_limit = int(min(max(vmem_needed + (4 << 20), MIN_VMEM_LIMIT),
                             MAX_VMEM_LIMIT))

        inter_p, total_p = pl.pallas_call(
            kernel,
            out_shape=(
                jax.ShapeDtypeStruct((ncores, ilp, 8, LANES), jnp.float32),
                jax.ShapeDtypeStruct((ncores, ilp, 8, LANES), jnp.float32),
            ),
            grid_spec=pltpu.PrefetchScalarGridSpec(
                num_scalar_prefetch=0,
                grid=(ncores, steps_per_core),
                in_specs=[
                    pl.BlockSpec((block_rows, LANES), in_map),
                    pl.BlockSpec((block_rows, LANES), in_map),
                ],
                out_specs=[
                    pl.BlockSpec((1, ilp, 8, LANES), lambda c, i: (c, 0, 0, 0)),
                    pl.BlockSpec((1, ilp, 8, LANES), lambda c, i: (c, 0, 0, 0)),
                ],
            ),
            compiler_params=pltpu.CompilerParams(
                # NOTE: on v7x, if profiling shows axis 0 running serially,
                # switch axis 0 to pltpu.CORE_PARALLEL for the 2-TC bandwidth.
                dimension_semantics=("parallel", "arbitrary"),
                vmem_limit_bytes=vmem_limit,
            ),
        )(x2, t2)

        # Tiny final cross-lane reduction + loss formula in plain XLA.
        intersection = jnp.sum(inter_p) + inter_tail
        total = jnp.sum(total_p) + total_tail

    union = total - intersection
    return 1.0 - (intersection + smooth) / (union + smooth)


def _reference(inputs, targets, smooth=1.0):
    s = jax.nn.sigmoid(inputs.astype(jnp.float32)).ravel()
    t = targets.astype(jnp.float32).ravel()
    intersection = jnp.sum(s * t)
    total = jnp.sum(s + t)
    union = total - intersection
    return 1.0 - (intersection + smooth) / (union + smooth)


if __name__ == "__main__":
    key = jax.random.PRNGKey(0)
    k1, k2 = jax.random.split(key)

    # NCHW-style logits and binary targets, as the PyTorch module expects.
    shape = (2, 4, 16, 16)
    inputs = jax.random.normal(k1, shape, dtype=jnp.float32)
    targets = (jax.random.uniform(k2, shape) > 0.5).astype(jnp.float32)

    loss = jax.block_until_ready(iou_loss(inputs, targets))
    ref = jax.block_until_ready(_reference(inputs, targets))
    assert jnp.allclose(loss, ref, atol=1e-5, rtol=1e-5), (loss, ref)

    # Second tiny check: non-lane-aligned element count (XLA-tail path).
    shape2 = (3, 5, 7, 11)
    k3, k4 = jax.random.split(k2)
    inputs2 = jax.random.normal(k3, shape2, dtype=jnp.float32)
    targets2 = (jax.random.uniform(k4, shape2) > 0.5).astype(jnp.float32)
    loss2 = jax.block_until_ready(iou_loss(inputs2, targets2))
    ref2 = jax.block_until_ready(_reference(inputs2, targets2))
    assert jnp.allclose(loss2, ref2, atol=1e-5, rtol=1e-5), (loss2, ref2)

    print("KERNEL_OK")
</pallas_src>

<mosaic_0001>
module attributes {stable_mosaic.version = 11 : i64} {
  func.func @_iou_kernel(%arg0: i32, %arg1: i32, %arg2: memref<16x128xf32, #tpu.memory_space<vmem>>, %arg3: memref<16x128xf32, #tpu.memory_space<vmem>>, %arg4: memref<1x2x8x128xf32, #tpu.memory_space<vmem>>, %arg5: memref<1x2x8x128xf32, #tpu.memory_space<vmem>>) attributes {dimension_semantics = [#tpu.dimension_semantics<parallel>, #tpu.dimension_semantics<arbitrary>], iteration_bounds = array<i64: 1, 1>, scalar_prefetch = 0 : i64, scratch_operands = 0 : i64, tpu.core_type = #tpu.core_type<tc>, window_params = [{transform_indices = @transform_0, window_bounds = array<i64: 16, 128>}, {transform_indices = @transform_1, window_bounds = array<i64: 16, 128>}, {transform_indices = @transform_2, window_bounds = array<i64: 1, 2, 8, 128>}, {transform_indices = @transform_3, window_bounds = array<i64: 1, 2, 8, 128>}]} {
    %c0_i32 = arith.constant 0 : i32
    %0 = arith.cmpi eq, %arg1, %c0_i32 : i32
    %1 = arith.extui %0 : i1 to i32
    %c0_i32_0 = arith.constant 0 : i32
    %2 = arith.cmpi ne, %1, %c0_i32_0 : i32
    scf.if %2 {
      %cst_22 = arith.constant 0.000000e+00 : f32
      %24 = vector.broadcast %cst_22 : f32 to vector<1x2x8x128xf32>
      %c0_23 = arith.constant 0 : index
      %c0_24 = arith.constant 0 : index
      %c0_25 = arith.constant 0 : index
      %c0_26 = arith.constant 0 : index
      %25 = vector.load %arg4[%c0_23, %c0_24, %c0_25, %c0_26] : memref<1x2x8x128xf32, #tpu.memory_space<vmem>>, vector<1x2x8x128xf32>
      tpu.vector_store %arg4[%c0_23, %c0_24, %c0_25, %c0_26], %24 {strides = array<i32>} : memref<1x2x8x128xf32, #tpu.memory_space<vmem>>, vector<1x2x8x128xf32>,
      %cst_27 = arith.constant 0.000000e+00 : f32
      %26 = vector.broadcast %cst_27 : f32 to vector<1x2x8x128xf32>
      %c0_28 = arith.constant 0 : index
      %c0_29 = arith.constant 0 : index
      %c0_30 = arith.constant 0 : index
      %c0_31 = arith.constant 0 : index
      %27 = vector.load %arg5[%c0_28, %c0_29, %c0_30, %c0_31] : memref<1x2x8x128xf32, #tpu.memory_space<vmem>>, vector<1x2x8x128xf32>
      tpu.vector_store %arg5[%c0_28, %c0_29, %c0_30, %c0_31], %26 {strides = array<i32>} : memref<1x2x8x128xf32, #tpu.memory_space<vmem>>, vector<1x2x8x128xf32>,
    } else {
    }
    %c0 = arith.constant 0 : index
    %c0_1 = arith.constant 0 : index
    %3 = vector.load %arg2[%c0, %c0_1] : memref<16x128xf32, #tpu.memory_space<vmem>>, vector<16x128xf32>
    %c0_2 = arith.constant 0 : index
    %c0_3 = arith.constant 0 : index
    %4 = vector.load %arg3[%c0_2, %c0_3] : memref<16x128xf32, #tpu.memory_space<vmem>>, vector<16x128xf32>
    %5 = arith.negf %3 : vector<16x128xf32>
    %6 = math.exp %5 : vector<16x128xf32>
    %cst = arith.constant 1.000000e+00 : f32
    %7 = vector.broadcast %cst : f32 to vector<16x128xf32>
    %8 = arith.addf %7, %6 : vector<16x128xf32>
    %9 = arith.divf %7, %8 : vector<16x128xf32>
    %10 = arith.mulf %9, %4 : vector<16x128xf32>
    %11 = arith.addf %9, %4 : vector<16x128xf32>
    %c0_4 = arith.constant 0 : index
    %c0_5 = arith.constant 0 : index
    %c0_6 = arith.constant 0 : index
    %c0_7 = arith.constant 0 : index
    %12 = vector.load %arg4[%c0_4, %c0_5, %c0_6, %c0_7] : memref<1x2x8x128xf32, #tpu.memory_space<vmem>>, vector<1x2x8x128xf32>
    %13 = vector.shape_cast %10 : vector<16x128xf32> to vector<1x2x8x128xf32>
    %cst_8 = arith.constant dense<0.000000e+00> : vector<2x8x128xf32>
    %14 = vector.multi_reduction <add>, %13, %cst_8 [0] : vector<1x2x8x128xf32> to vector<2x8x128xf32>
    %15 = vector.shape_cast %14 : vector<2x8x128xf32> to vector<1x2x8x128xf32>
    %16 = arith.addf %12, %15 : vector<1x2x8x128xf32>
    %c0_9 = arith.constant 0 : index
    %c0_10 = arith.constant 0 : index
    %c0_11 = arith.constant 0 : index
    %c0_12 = arith.constant 0 : index
    %17 = vector.load %arg4[%c0_9, %c0_10, %c0_11, %c0_12] : memref<1x2x8x128xf32, #tpu.memory_space<vmem>>, vector<1x2x8x128xf32>
    tpu.vector_store %arg4[%c0_9, %c0_10, %c0_11, %c0_12], %16 {strides = array<i32>} : memref<1x2x8x128xf32, #tpu.memory_space<vmem>>, vector<1x2x8x128xf32>,
    %c0_13 = arith.constant 0 : index
    %c0_14 = arith.constant 0 : index
    %c0_15 = arith.constant 0 : index
    %c0_16 = arith.constant 0 : index
    %18 = vector.load %arg5[%c0_13, %c0_14, %c0_15, %c0_16] : memref<1x2x8x128xf32, #tpu.memory_space<vmem>>, vector<1x2x8x128xf32>
    %19 = vector.shape_cast %11 : vector<16x128xf32> to vector<1x2x8x128xf32>
    %cst_17 = arith.constant dense<0.000000e+00> : vector<2x8x128xf32>
    %20 = vector.multi_reduction <add>, %19, %cst_17 [0] : vector<1x2x8x128xf32> to vector<2x8x128xf32>
    %21 = vector.shape_cast %20 : vector<2x8x128xf32> to vector<1x2x8x128xf32>
    %22 = arith.addf %18, %21 : vector<1x2x8x128xf32>
    %c0_18 = arith.constant 0 : index
    %c0_19 = arith.constant 0 : index
    %c0_20 = arith.constant 0 : index
    %c0_21 = arith.constant 0 : index
    %23 = vector.load %arg5[%c0_18, %c0_19, %c0_20, %c0_21] : memref<1x2x8x128xf32, #tpu.memory_space<vmem>>, vector<1x2x8x128xf32>
    tpu.vector_store %arg5[%c0_18, %c0_19, %c0_20, %c0_21], %22 {strides = array<i32>} : memref<1x2x8x128xf32, #tpu.memory_space<vmem>>, vector<1x2x8x128xf32>,
    return
  }
  func.func @transform_0(%arg0: i32, %arg1: i32) -> (i32, i32) {
    %c1_i32 = arith.constant 1 : i32
    %0 = arith.muli %arg0, %c1_i32 : i32
    %1 = arith.addi %0, %arg1 : i32
    %c0_i32 = arith.constant 0 : i32
    %2 = arith.minsi %1, %c0_i32 : i32
    %c0_i32_0 = arith.constant 0 : i32
    %c0_i32_1 = arith.constant 0 : i32
    return %2, %c0_i32_0 : i32, i32
  }
  func.func @transform_1(%arg0: i32, %arg1: i32) -> (i32, i32) {
    %c1_i32 = arith.constant 1 : i32
    %0 = arith.muli %arg0, %c1_i32 : i32
    %1 = arith.addi %0, %arg1 : i32
    %c0_i32 = arith.constant 0 : i32
    %2 = arith.minsi %1, %c0_i32 : i32
    %c0_i32_0 = arith.constant 0 : i32
    %c0_i32_1 = arith.constant 0 : i32
    return %2, %c0_i32_0 : i32, i32
  }
  func.func @transform_2(%arg0: i32, %arg1: i32) -> (i32, i32, i32, i32) {
    %c0_i32 = arith.constant 0 : i32
    %c0_i32_0 = arith.constant 0 : i32
    %c0_i32_1 = arith.constant 0 : i32
    %c0_i32_2 = arith.constant 0 : i32
    return %arg0, %c0_i32, %c0_i32_0, %c0_i32_1 : i32, i32, i32, i32
  }
  func.func @transform_3(%arg0: i32, %arg1: i32) -> (i32, i32, i32, i32) {
    %c0_i32 = arith.constant 0 : i32
    %c0_i32_0 = arith.constant 0 : i32
    %c0_i32_1 = arith.constant 0 : i32
    %c0_i32_2 = arith.constant 0 : i32
    return %arg0, %c0_i32, %c0_i32_0, %c0_i32_1 : i32, i32, i32, i32
  }
}

</mosaic_0001>

<llo_original>
// kernel: tpu_custom_call.1
$region0: #{tpu_custom_call.1}
  #allocation0 [shape = 'u32[]', space=smem, size = 0x4, offset = 0x4, fixed_abs, tag = 'smem constant byte address 0x4 - core index']
  #allocation1 [shape = 'u32[144,128]{1,0:T(1,128)}', space=vmem, size = 0x12000, scoped, tag = 'internal scratch']
  %s0 = inlined_call_operand.hbm [shape: f32[16,128], index: 0, kind: input, shape index: {}]
  %s1 = inlined_call_operand.hbm [shape: f32[16,128], index: 1, kind: input, shape index: {}]
  %s2 = inlined_call_operand.hbm [shape: f32[1,2,8,128], index: 2, kind: output, shape index: {0}]
  %s3 = inlined_call_operand.hbm [shape: f32[1,2,8,128], index: 3, kind: output, shape index: {1}]
  %4 = xla_tuple %s2, %s3
  %s5 = sld [smem:[#allocation0]]
  $region38: #{tpu_custom_call.1} parent=0
    _
  %s7 = ssub.s32 1, %s5
  %s8 = scalar_select 0, %s7, %s5
  $region1: #{tpu_custom_call.1} parent=0
    #allocation2 [shape = 'u8[8192]{0}', space=vmem, size = 0x2000, scoped, tag = 'input window, operand 0, single buffered']
    #allocation3 [shape = 's32[1]{0}', space=sflag, size = 0x4, scoped, tag = 'scoped memory for tpu_custom_call.1']
    #allocation4 [shape = 's32[1]{0}', space=sflag, size = 0x4, scoped, tag = 'scoped memory for tpu_custom_call.1']
    #allocation5 [shape = 'u8[8192]{0}', space=vmem, size = 0x2000, scoped, tag = 'input window, operand 1, single buffered']
    #allocation6 [shape = 's32[1]{0}', space=sflag, size = 0x4, scoped, tag = 'scoped memory for tpu_custom_call.1']
    #allocation7 [shape = 'u8[8192]{0}', space=vmem, size = 0x2000, scoped, tag = 'output window, operand 0, single buffered']
    #allocation8 [shape = 'u8[8192]{0}', space=vmem, size = 0x2000, scoped, tag = 'output window, operand 1, single buffered']
    #allocation9 [shape = 's32[1]{0}', space=sflag, size = 0x4, scoped, tag = 'scoped memory for tpu_custom_call.1']
    %9 = vsyncpa [#allocation3], 0
    %10 = vsyncpa [#allocation6], 0
    %11 = vsyncpa [#allocation4], 0
    %12 = vsyncpa [#allocation9], 0
    // Predicated region
    $region2: #{tpu_custom_call.1} parent=1 // pred_check
      _
    $region3: #{tpu_custom_call.1} parent=1 // pred_check_branch
      %14 = sbr.rel (0) target = $region5
    $region4: #{tpu_custom_call.1} parent=1 // pred_region
      %s15 = sadd.s32 0, 0
      %p16 = scmp.lt.s32.totalorder %s15, 0
      %s17 = scalar_select %p16, %s15, 0
      %s18 = smul.u32 2, %s17
      %s20 = ssub.s32 256, 256
      %21 = vsyncadd [#allocation3], %s20
      %s22 = smul.addr %s18, 128
      %s23 = scalar_lea.hbm %s0, %s22
      %s24 = sshll.u32 [#allocation2], 4
      %s25 = int_to_ptr.vmem [resolvable:$true] %s24
      %30 = dma.hbm_to_vmem [thread:$0]  %s23, 256, %s25, [#allocation3], 128, 128, 8
    $region5: #{tpu_custom_call.1} parent=1 // pred_fallthru
      _
    // Predicated region
    $region6: #{tpu_custom_call.1} parent=1 // pred_check
      _
    $region7: #{tpu_custom_call.1} parent=1 // pred_check_branch
      %32 = sbr.rel (0) target = $region9
    $region8: #{tpu_custom_call.1} parent=1 // pred_region
      %s33 = sadd.s32 0, 0
      %p34 = scmp.lt.s32.totalorder %s33, 0
      %s35 = scalar_select %p34, %s33, 0
      %s36 = smul.u32 2, %s35
      %s38 = ssub.s32 256, 256
      %39 = vsyncadd [#allocation6], %s38
      %s40 = smul.addr %s36, 128
      %s41 = scalar_lea.hbm %s1, %s40
      %s42 = sshll.u32 [#allocation5], 4
      %s43 = int_to_ptr.vmem [resolvable:$true] %s42
      %48 = dma.hbm_to_vmem [thread:$0]  %s41, 256, %s43, [#allocation6], 128, 128, 8
    $region9: #{tpu_custom_call.1} parent=1 // pred_fallthru
      _
    // Predicated region
    $region10: #{tpu_custom_call.1} parent=1 // pred_check
      _
    $region11: #{tpu_custom_call.1} parent=1 // pred_check_branch
      %50 = sbr.rel (0) target = $region13
    $region12: #{tpu_custom_call.1} parent=1 // pred_region
      %51 = dma.done [#allocation3], 256
    $region13: #{tpu_custom_call.1} parent=1 // pred_fallthru
      _
    // Predicated region
    $region14: #{tpu_custom_call.1} parent=1 // pred_check
      _
    $region15: #{tpu_custom_call.1} parent=1 // pred_check_branch
      %53 = sbr.rel (0) target = $region17
    $region16: #{tpu_custom_call.1} parent=1 // pred_region
      %54 = dma.done [#allocation6], 256
    $region17: #{tpu_custom_call.1} parent=1 // pred_fallthru
      _
    %s55 = sadd.s32 0, 0
    %p56 = scmp.lt.s32.totalorder %s55, 0
    %s57 = scalar_select %p56, %s55, 0
    %s58 = smul.u32 2, %s57
    %s59 = sadd.s32 0, 0
    %p60 = scmp.lt.s32.totalorder %s59, 0
    %s61 = scalar_select %p60, %s59, 0
    %s62 = smul.u32 2, %s61
    %p63 = scmp.eq.s32.totalorder 0, 0
    // Predicated region
    $region18: #{tpu_custom_call.1} parent=1 // pred_check
      %p64 = pneg %p63
    $region19: #{tpu_custom_call.1} parent=1 // pred_check_branch
      %66 = sbr.rel (%p64) target = $region21
    $region20: #{tpu_custom_call.1} parent=1 // pred_region
      %67 = vst [vmem:[#allocation7] sm:$0xff] 0.0
      %68 = vst [vmem:[#allocation7 + $0x8] sm:$0xff] 0.0
      %69 = vst [vmem:[#allocation8] sm:$0xff] 0.0
      %70 = vst [vmem:[#allocation8 + $0x8] sm:$0xff] 0.0
    $region21: #{tpu_custom_call.1} parent=1 // pred_fallthru
      _
    %v71 = vld [vmem:[#allocation2] sm:$0xff]
    %v72 = vld [vmem:[#allocation2 + $0x8] sm:$0xff]
    %v73 = vld [vmem:[#allocation5] sm:$0xff]
    %v74 = vld [vmem:[#allocation5 + $0x8] sm:$0xff]
    %v75 = vxor.u32 %v71, 2147483648
    %v76 = vxor.u32 %v72, 2147483648
    %v77 = vmul.f32 %v75, 1.442695
    %v78 = vpow.pop %v77
    %v79 = vmul.f32 %v76, 1.442695
    %v80 = vpow.pop %v79
    %v81 = vadd.f32 %v78, 1.0
    %v82 = vadd.f32 %v80, 1.0
    %v83 = vrcp.pop %v81
    %v84 = vmul.f32 1.0, %v83
    %v85 = vrcp.pop %v82
    %v86 = vmul.f32 1.0, %v85
    %v87 = vmul.f32 %v84, %v73
    %v88 = vmul.f32 %v86, %v74
    %v89 = vadd.f32 %v84, %v73
    %v90 = vadd.f32 %v86, %v74
    %v91 = vld [vmem:[#allocation7] sm:$0xff]
    %v92 = vld [vmem:[#allocation7 + $0x8] sm:$0xff]
    %v93 = vadd.f32 %v87, 0.0
    %v94 = vadd.f32 %v88, 0.0
    %v95 = vadd.f32 %v91, %v93
    %v96 = vadd.f32 %v92, %v94
    %97 = vst [vmem:[#allocation7] sm:$0xff] %v95
    %98 = vst [vmem:[#allocation7 + $0x8] sm:$0xff] %v96
    %v99 = vld [vmem:[#allocation8] sm:$0xff]
    %v100 = vld [vmem:[#allocation8 + $0x8] sm:$0xff]
    %v101 = vadd.f32 %v89, 0.0
    %v102 = vadd.f32 %v90, 0.0
    %v103 = vadd.f32 %v99, %v101
    %v104 = vadd.f32 %v100, %v102
    %105 = vst [vmem:[#allocation8] sm:$0xff] %v103
    %106 = vst [vmem:[#allocation8 + $0x8] sm:$0xff] %v104
    // Predicated region
    $region22: #{tpu_custom_call.1} parent=1 // pred_check
      _
    $region23: #{tpu_custom_call.1} parent=1 // pred_check_branch
      %108 = sbr.rel (0) target = $region25
    $region24: #{tpu_custom_call.1} parent=1 // pred_region
      %s110 = ssub.s32 256, 256
      %111 = vsyncadd [#allocation4], %s110
      %s112 = sshll.u32 [#allocation7], 4
      %s113 = int_to_ptr.vmem [resolvable:$true] %s112
      %118 = dma.vmem_to_hbm [thread:$0]  %s113, 256, %s2, [#allocation4], 128, 128, 8
    $region25: #{tpu_custom_call.1} parent=1 // pred_fallthru
      _
    // Predicated region
    $region26: #{tpu_custom_call.1} parent=1 // pred_check
      _
    $region27: #{tpu_custom_call.1} parent=1 // pred_check_branch
      %120 = sbr.rel (0) target = $region29
    $region28: #{tpu_custom_call.1} parent=1 // pred_region
      %s122 = ssub.s32 256, 256
      %123 = vsyncadd [#allocation9], %s122
      %s124 = sshll.u32 [#allocation8], 4
      %s125 = int_to_ptr.vmem [resolvable:$true] %s124
      %130 = dma.vmem_to_hbm [thread:$0]  %s125, 256, %s3, [#allocation9], 128, 128, 8
    $region29: #{tpu_custom_call.1} parent=1 // pred_fallthru
      _
    // Predicated region
    $region30: #{tpu_custom_call.1} parent=1 // pred_check
      _
    $region31: #{tpu_custom_call.1} parent=1 // pred_check_branch
      %132 = sbr.rel (0) target = $region33
    $region32: #{tpu_custom_call.1} parent=1 // pred_region
      %133 = dma.done [#allocation4], 256
    $region33: #{tpu_custom_call.1} parent=1 // pred_fallthru
      _
    // Predicated region
    $region34: #{tpu_custom_call.1} parent=1 // pred_check
      _
    $region35: #{tpu_custom_call.1} parent=1 // pred_check_branch
      %135 = sbr.rel (0) target = $region37
    $region36: #{tpu_custom_call.1} parent=1 // pred_region
      %136 = dma.done [#allocation9], 256
    $region37: #{tpu_custom_call.1} parent=1 // pred_fallthru
      _
    %137 = vsyncpa [#allocation3], 1
    %138 = vsyncpa [#allocation6], 1
    %139 = vsyncpa [#allocation4], 1
    %140 = vsyncpa [#allocation9], 1

</llo_original>
